<compile_context>
chip_gen: v7x
topology: tpu7x:2x2x1
jax: 0.10.0
libtpu: 0.0.40
codegen_flags: <defaults>
</compile_context>

<pallas_src>
import jax
import jax.numpy as jnp
from jax.experimental import pallas as pl
from jax.experimental.pallas import tpu as pltpu


def soft_dot_attention_kernel(h_ref, ctx_ref, w_in_ref, w_out_c_ref, w_out_h_ref,
                              h_tilde_ref, attn_ref):
    # h_ref:       (tb, Dq)        ctx_ref:     (tb, S, Dc)
    # w_in_ref:    (Dq, Dc)        w_out_c_ref: (Dc, Dq)      w_out_h_ref: (Dq, Dq)
    # h_tilde_ref: (tb, Dq)        attn_ref:    (tb, S)
    h = h_ref[...]
    ctx = ctx_ref[...]

    # linear_in (no bias): target = h @ W_in^T  -- MXU, f32 accumulate.
    target = jnp.dot(h, w_in_ref[...], preferred_element_type=jnp.float32)

    # Attention logits: per-row dot(context[b, s, :], target[b, :]).  A width-1
    # batched matmul would waste the MXU, so do VPU multiply + lane reduce (XLU).
    logits = jnp.sum(ctx * target[:, None, :], axis=-1)            # (tb, S) f32

    # Softmax over the sequence axis (mask=None path).
    m = jnp.max(logits, axis=-1, keepdims=True)
    e = jnp.exp(logits - m)
    attn = e / jnp.sum(e, axis=-1, keepdims=True)                  # (tb, S) f32

    # Weighted context: sum_s attn[b, s] * context[b, s, :] -- again VPU + reduce
    # instead of an M=1 batched matmul.
    wctx = jnp.sum(attn[:, :, None] * ctx, axis=1)                 # (tb, Dc) f32

    # linear_out (no bias) on cat([wctx, h]); split into two MXU matmuls.
    pre = (jnp.dot(wctx, w_out_c_ref[...], preferred_element_type=jnp.float32)
           + jnp.dot(h, w_out_h_ref[...], preferred_element_type=jnp.float32))
    h_tilde_ref[...] = jnp.tanh(pre).astype(h_tilde_ref.dtype)
    attn_ref[...] = attn.astype(attn_ref.dtype)


def soft_dot_attention(h, context, w_in, w_out_c, w_out_h, *, tile_b=None):
    """h: (B, Dq), context: (B, S, Dc).  Weights pre-transposed (D_in, D_out).
    Returns (h_tilde (B, Dq), attn (B, S))."""
    B, Dq = h.shape
    Bc, S, Dc = context.shape
    assert Bc == B

    if tile_b is None:
        # Prefer a sublane-aligned tile (multiple of 8) that gives grid >= 2 so the
        # batch axis pipelines and can shard across TensorCores; cap at 512 rows.
        tile_b = B
        for cand in (512, 256, 128, 64, 32, 16, 8):
            if B % cand == 0 and B // cand >= 2:
                tile_b = cand
                break
    assert B % tile_b == 0

    h_tilde, attn = pl.pallas_call(
        soft_dot_attention_kernel,
        out_shape=(jax.ShapeDtypeStruct((B, Dq), h.dtype),
                   jax.ShapeDtypeStruct((B, S), jnp.float32)),
        grid_spec=pltpu.PrefetchScalarGridSpec(
            num_scalar_prefetch=0,
            grid=(B // tile_b,),
            in_specs=[
                pl.BlockSpec((tile_b, Dq), lambda i: (i, 0)),        # h tile
                pl.BlockSpec((tile_b, S, Dc), lambda i: (i, 0, 0)),  # context tile
                pl.BlockSpec((Dq, Dc), lambda i: (0, 0)),            # W_in^T (full)
                pl.BlockSpec((Dc, Dq), lambda i: (0, 0)),            # W_out^T (ctx part)
                pl.BlockSpec((Dq, Dq), lambda i: (0, 0)),            # W_out^T (h part)
            ],
            out_specs=(pl.BlockSpec((tile_b, Dq), lambda i: (i, 0)),  # h_tilde
                       pl.BlockSpec((tile_b, S), lambda i: (i, 0))),  # attn
        ),
        compiler_params=pltpu.CompilerParams(
            dimension_semantics=("parallel",),
        ),
    )(h, context, w_in, w_out_c, w_out_h)
    return h_tilde, attn


def init_params(key, query_dim, ctx_dim):
    """nn.Linear-style uniform(+-1/sqrt(fan_in)) init, weights pre-transposed
    (D_in, D_out).  linear_out's weight is returned pre-split into the rows that
    multiply weighted_context and the rows that multiply h."""
    k1, k2, k3 = jax.random.split(key, 3)
    bound_in = 1.0 / jnp.sqrt(query_dim)
    bound_out = 1.0 / jnp.sqrt(query_dim + ctx_dim)
    w_in = jax.random.uniform(k1, (query_dim, ctx_dim), jnp.float32, -bound_in, bound_in)
    w_out_c = jax.random.uniform(k2, (ctx_dim, query_dim), jnp.float32, -bound_out, bound_out)
    w_out_h = jax.random.uniform(k3, (query_dim, query_dim), jnp.float32, -bound_out, bound_out)
    return w_in, w_out_c, w_out_h


if __name__ == "__main__":
    B, S, QUERY_DIM, CTX_DIM = 16, 8, 32, 32   # small synthetic sizes

    key = jax.random.PRNGKey(0)
    k_h, k_ctx, k_params = jax.random.split(key, 3)
    h = jax.random.normal(k_h, (B, QUERY_DIM), jnp.float32)
    context = jax.random.normal(k_ctx, (B, S, CTX_DIM), jnp.float32)
    w_in, w_out_c, w_out_h = init_params(k_params, QUERY_DIM, CTX_DIM)

    h_tilde, attn = soft_dot_attention(h, context, w_in, w_out_c, w_out_h)
    h_tilde = jax.block_until_ready(h_tilde)
    attn = jax.block_until_ready(attn)

    # Pure-JAX reference (default path: mask=None, output_tilde=True, output_prob=True)
    target_ref = h @ w_in
    logits_ref = jnp.sum(context * target_ref[:, None, :], axis=-1)
    attn_ref = jax.nn.softmax(logits_ref, axis=-1)
    wctx_ref = jnp.sum(attn_ref[:, :, None] * context, axis=1)
    h_tilde_ref = jnp.tanh(wctx_ref @ w_out_c + h @ w_out_h)

    assert h_tilde.shape == (B, QUERY_DIM)
    assert attn.shape == (B, S)
    assert jnp.allclose(attn, attn_ref, atol=1e-5, rtol=1e-5), "attn mismatch vs reference"
    assert jnp.allclose(h_tilde, h_tilde_ref, atol=1e-5, rtol=1e-5), "h_tilde mismatch vs reference"
    print("KERNEL_OK")
</pallas_src>

<mosaic_0001>
module attributes {stable_mosaic.version = 11 : i64} {
  func.func @soft_dot_attention_kernel(%arg0: i32, %arg1: memref<8x32xf32, #tpu.memory_space<vmem>>, %arg2: memref<8x8x32xf32, #tpu.memory_space<vmem>>, %arg3: memref<32x32xf32, #tpu.memory_space<vmem>>, %arg4: memref<32x32xf32, #tpu.memory_space<vmem>>, %arg5: memref<32x32xf32, #tpu.memory_space<vmem>>, %arg6: memref<8x32xf32, #tpu.memory_space<vmem>>, %arg7: memref<8x8xf32, #tpu.memory_space<vmem>>) attributes {dimension_semantics = [#tpu.dimension_semantics<parallel>], iteration_bounds = array<i64: 2>, scalar_prefetch = 0 : i64, scratch_operands = 0 : i64, tpu.core_type = #tpu.core_type<tc>, window_params = [{transform_indices = @transform_0, window_bounds = array<i64: 8, 32>}, {transform_indices = @transform_1, window_bounds = array<i64: 8, 8, 32>}, {pipeline_mode = #tpu.pipeline_mode<synchronous>, transform_indices = @transform_2, window_bounds = array<i64: 32, 32>}, {pipeline_mode = #tpu.pipeline_mode<synchronous>, transform_indices = @transform_3, window_bounds = array<i64: 32, 32>}, {pipeline_mode = #tpu.pipeline_mode<synchronous>, transform_indices = @transform_4, window_bounds = array<i64: 32, 32>}, {transform_indices = @transform_5, window_bounds = array<i64: 8, 32>}, {transform_indices = @transform_6, window_bounds = array<i64: 8, 8>}]} {
    %c0 = arith.constant 0 : index
    %c0_0 = arith.constant 0 : index
    %0 = vector.load %arg1[%c0, %c0_0] : memref<8x32xf32, #tpu.memory_space<vmem>>, vector<8x32xf32>
    %c0_1 = arith.constant 0 : index
    %c0_2 = arith.constant 0 : index
    %c0_3 = arith.constant 0 : index
    %1 = vector.load %arg2[%c0_1, %c0_2, %c0_3] : memref<8x8x32xf32, #tpu.memory_space<vmem>>, vector<8x8x32xf32>
    %c0_4 = arith.constant 0 : index
    %c0_5 = arith.constant 0 : index
    %2 = vector.load %arg3[%c0_4, %c0_5] : memref<32x32xf32, #tpu.memory_space<vmem>>, vector<32x32xf32>
    %cst = arith.constant dense<0.000000e+00> : vector<8x32xf32>
    %3 = tpu.matmul %0, %2, %cst {dimension_numbers = #tpu.dot_dimension_numbers<[1], [0], [0], [1], [0, 0, 1, 1], [], []>} : vector<8x32xf32>, vector<32x32xf32>, vector<8x32xf32> -> vector<8x32xf32>
    %4 = vector.shape_cast %3 : vector<8x32xf32> to vector<8x1x32xf32>
    %5 = vector.broadcast %4 : vector<8x1x32xf32> to vector<8x8x32xf32>
    %6 = arith.mulf %1, %5 : vector<8x8x32xf32>
    %cst_6 = arith.constant dense<0.000000e+00> : vector<8x8xf32>
    %7 = vector.multi_reduction <add>, %6, %cst_6 [2] : vector<8x8x32xf32> to vector<8x8xf32>
    %cst_7 = arith.constant dense<0xFF800000> : vector<8xf32>
    %8 = vector.multi_reduction <maximumf>, %7, %cst_7 [1] : vector<8x8xf32> to vector<8xf32>
    %9 = vector.shape_cast %8 : vector<8xf32> to vector<8x1xf32>
    %10 = vector.broadcast %9 : vector<8x1xf32> to vector<8x8xf32>
    %11 = arith.subf %7, %10 : vector<8x8xf32>
    %12 = math.exp %11 : vector<8x8xf32>
    %cst_8 = arith.constant dense<0.000000e+00> : vector<8xf32>
    %13 = vector.multi_reduction <add>, %12, %cst_8 [1] : vector<8x8xf32> to vector<8xf32>
    %14 = vector.shape_cast %13 : vector<8xf32> to vector<8x1xf32>
    %15 = vector.broadcast %14 : vector<8x1xf32> to vector<8x8xf32>
    %16 = arith.divf %12, %15 : vector<8x8xf32>
    %17 = vector.shape_cast %16 : vector<8x8xf32> to vector<8x8x1xf32>
    %18 = vector.broadcast %17 : vector<8x8x1xf32> to vector<8x8x32xf32>
    %19 = arith.mulf %18, %1 : vector<8x8x32xf32>
    %cst_9 = arith.constant dense<0.000000e+00> : vector<8x32xf32>
    %20 = vector.multi_reduction <add>, %19, %cst_9 [1] : vector<8x8x32xf32> to vector<8x32xf32>
    %c0_10 = arith.constant 0 : index
    %c0_11 = arith.constant 0 : index
    %21 = vector.load %arg4[%c0_10, %c0_11] : memref<32x32xf32, #tpu.memory_space<vmem>>, vector<32x32xf32>
    %cst_12 = arith.constant dense<0.000000e+00> : vector<8x32xf32>
    %22 = tpu.matmul %20, %21, %cst_12 {dimension_numbers = #tpu.dot_dimension_numbers<[1], [0], [0], [1], [0, 0, 1, 1], [], []>} : vector<8x32xf32>, vector<32x32xf32>, vector<8x32xf32> -> vector<8x32xf32>
    %c0_13 = arith.constant 0 : index
    %c0_14 = arith.constant 0 : index
    %23 = vector.load %arg5[%c0_13, %c0_14] : memref<32x32xf32, #tpu.memory_space<vmem>>, vector<32x32xf32>
    %cst_15 = arith.constant dense<0.000000e+00> : vector<8x32xf32>
    %24 = tpu.matmul %0, %23, %cst_15 {dimension_numbers = #tpu.dot_dimension_numbers<[1], [0], [0], [1], [0, 0, 1, 1], [], []>} : vector<8x32xf32>, vector<32x32xf32>, vector<8x32xf32> -> vector<8x32xf32>
    %25 = arith.addf %22, %24 : vector<8x32xf32>
    %26 = math.tanh %25 : vector<8x32xf32>
    %c0_16 = arith.constant 0 : index
    %c0_17 = arith.constant 0 : index
    %27 = vector.load %arg6[%c0_16, %c0_17] : memref<8x32xf32, #tpu.memory_space<vmem>>, vector<8x32xf32>
    tpu.vector_store %arg6[%c0_16, %c0_17], %26 {strides = array<i32>} : memref<8x32xf32, #tpu.memory_space<vmem>>, vector<8x32xf32>,
    %c0_18 = arith.constant 0 : index
    %c0_19 = arith.constant 0 : index
    %28 = vector.load %arg7[%c0_18, %c0_19] : memref<8x8xf32, #tpu.memory_space<vmem>>, vector<8x8xf32>
    tpu.vector_store %arg7[%c0_18, %c0_19], %16 {strides = array<i32>} : memref<8x8xf32, #tpu.memory_space<vmem>>, vector<8x8xf32>,
    return
  }
  func.func @transform_0(%arg0: i32) -> (i32, i32) {
    %c0_i32 = arith.constant 0 : i32
    %c0_i32_0 = arith.constant 0 : i32
    return %arg0, %c0_i32 : i32, i32
  }
  func.func @transform_1(%arg0: i32) -> (i32, i32, i32) {
    %c0_i32 = arith.constant 0 : i32
    %c0_i32_0 = arith.constant 0 : i32
    %c0_i32_1 = arith.constant 0 : i32
    return %arg0, %c0_i32, %c0_i32_0 : i32, i32, i32
  }
  func.func @transform_2(%arg0: i32) -> (i32, i32) {
    %c0_i32 = arith.constant 0 : i32
    %c0_i32_0 = arith.constant 0 : i32
    %c0_i32_1 = arith.constant 0 : i32
    return %c0_i32, %c0_i32_0 : i32, i32
  }
  func.func @transform_3(%arg0: i32) -> (i32, i32) {
    %c0_i32 = arith.constant 0 : i32
    %c0_i32_0 = arith.constant 0 : i32
    %c0_i32_1 = arith.constant 0 : i32
    return %c0_i32, %c0_i32_0 : i32, i32
  }
  func.func @transform_4(%arg0: i32) -> (i32, i32) {
    %c0_i32 = arith.constant 0 : i32
    %c0_i32_0 = arith.constant 0 : i32
    %c0_i32_1 = arith.constant 0 : i32
    return %c0_i32, %c0_i32_0 : i32, i32
  }
  func.func @transform_5(%arg0: i32) -> (i32, i32) {
    %c0_i32 = arith.constant 0 : i32
    %c0_i32_0 = arith.constant 0 : i32
    return %arg0, %c0_i32 : i32, i32
  }
  func.func @transform_6(%arg0: i32) -> (i32, i32) {
    %c0_i32 = arith.constant 0 : i32
    %c0_i32_0 = arith.constant 0 : i32
    return %arg0, %c0_i32 : i32, i32
  }
}

</mosaic_0001>

<llo_original>
// kernel: tpu_custom_call.1
$region0: #{tpu_custom_call.1}
  #allocation0 [shape = 'u32[]', space=smem, size = 0x4, offset = 0x4, fixed_abs, tag = 'smem constant byte address 0x4 - core index']
  #allocation1 [shape = 'u32[144,128]{1,0:T(1,128)}', space=vmem, size = 0x12000, scoped, tag = 'internal scratch']
  %s0 = inlined_call_operand.hbm [shape: f32[16,32], index: 0, kind: input, shape index: {}]
  %s1 = inlined_call_operand.hbm [shape: f32[16,8,32], index: 1, kind: input, shape index: {}]
  %s2 = inlined_call_operand.hbm [shape: f32[32,32], index: 2, kind: input, shape index: {}]
  %s3 = inlined_call_operand.hbm [shape: f32[32,32], index: 3, kind: input, shape index: {}]
  %s4 = inlined_call_operand.hbm [shape: f32[32,32], index: 4, kind: input, shape index: {}]
  %s5 = inlined_call_operand.hbm [shape: f32[16,32], index: 5, kind: output, shape index: {0}]
  %s6 = inlined_call_operand.vmem [shape: f32[16,8], index: 6, kind: output, shape index: {1}]
  %7 = xla_tuple %s5, %s6
  %s8 = sld [smem:[#allocation0]]
  $region81: #{tpu_custom_call.1} parent=0
    _
  %s10 = ssub.s32 1, %s8
  %s11 = scalar_select 0, %s10, %s8
  $region1: #{tpu_custom_call.1} parent=0
    #allocation2 [shape = 'u8[8192]{0}', space=vmem, size = 0x2000, scoped, tag = 'input window, operand 0']
    #allocation3 [shape = 's32[2]{0}', space=sflag, size = 0x8, scoped, tag = 'scoped memory for tpu_custom_call.1']
    #allocation4 [shape = 's32[2]{0}', space=sflag, size = 0x8, scoped, tag = 'scoped memory for tpu_custom_call.1']
    #allocation5 [shape = 'u8[65536]{0}', space=vmem, size = 0x10000, scoped, tag = 'input window, operand 1']
    #allocation6 [shape = 's32[2]{0}', space=sflag, size = 0x8, scoped, tag = 'scoped memory for tpu_custom_call.1']
    #allocation7 [shape = 'u8[16384]{0}', space=vmem, size = 0x4000, scoped, tag = 'input window, operand 2, single buffered']
    #allocation8 [shape = 'u8[16384]{0}', space=vmem, size = 0x4000, scoped, tag = 'input window, operand 3, single buffered']
    #allocation9 [shape = 's32[1]{0}', space=sflag, size = 0x4, scoped, tag = 'scoped memory for tpu_custom_call.1']
    #allocation10 [shape = 'u8[16384]{0}', space=vmem, size = 0x4000, scoped, tag = 'input window, operand 4, single buffered']
    #allocation11 [shape = 'u8[8192]{0}', space=vmem, size = 0x2000, scoped, tag = 'output window, operand 0']
    %12 = vsyncpa [#allocation3], 0
    %s13 = scalar_lea.sflag [#allocation3], 1
    %14 = vsyncpa %s13, 0
    %15 = vsyncpa [#allocation6], 0
    %s16 = scalar_lea.sflag [#allocation6], 1
    %17 = vsyncpa %s16, 0
    %18 = vsyncpa [#allocation9], 0
    %19 = vsyncpa [#allocation4], 0
    %s20 = scalar_lea.sflag [#allocation4], 1
    %21 = vsyncpa %s20, 0
    loop: start=0, step=1, limit=4
    $region2: #{tpu_custom_call.1} parent=1 // loop_pre_header
      _
    $region3: #{tpu_custom_call.1} parent=1 // loop_header
      %s23 = sphi 0, %s27
      %p24 = scmp.ge.s32.totalorder %s23, 4
      %s33 = sphi 0, %s35
      %s36 = sphi 0, %s33
      %s37 = sphi 0, %s36
      %s53 = sphi 0, %s37
      %s59 = sphi 0, %s61
      %s62 = sphi 0, %s59
      %s63 = sphi 0, %s62
      %s79 = sphi 0, %s63
      %s83 = sphi 0, %s83
      %s85 = sphi 0, %s83
      %s86 = sphi 0, %s85
      %s100 = sphi 0, %s86
      %s104 = sphi 0, %s104
      %s106 = sphi 0, %s104
      %s107 = sphi 0, %s106
      %s121 = sphi 0, %s107
      %s125 = sphi 0, %s125
      %s127 = sphi 0, %s125
      %s128 = sphi 0, %s127
      %s142 = sphi 0, %s128
      %s148 = sphi 0, %s150
      %s151 = sphi 0, %s148
      %s152 = sphi 0, %s151
      %s168 = sphi 0, %s152
      %s174 = sphi 0, %s176
      %s177 = sphi 0, %s174
      %s178 = sphi 0, %s177
      %s194 = sphi 0, %s178
    $region4: #{tpu_custom_call.1} parent=1 // loop_header_branch
      %26 = sbr.rel (%p24) target = $region8
    $region5: #{tpu_custom_call.1} parent=1 // loop_body
      %s28 = ssub.s32 %s23, 1
      %s29 = ssub.s32 %s23, 2
      %s30 = sadd.s32 %s23, 1
      %s31 = ssub.s32 %s23, %s30
      %p32 = scmp.eq.s32.totalorder %s31, 0
      %s34 = sadd.s32 %s33, 1
      %s35 = scalar_select %p32, %s33, %s34
      %p38 = pneg %p32
      %p39 = scmp.eq.s32.totalorder %s23, 1
      %p40 = por %p38, %p39
      %p41 = scmp.ne.s32.totalorder %s33, %s36
      %p42 = scmp.eq.s32.totalorder %s23, 0
      %p43 = por %p41, %p42
      %p44 = scmp.ne.s32.totalorder %s33, %s36
      %p45 = scmp.eq.s32.totalorder %s28, 1
      %p46 = por %p44, %p45
      %p47 = scmp.ne.s32.totalorder %s36, %s37
      %p48 = scmp.eq.s32.totalorder %s28, 0
      %p49 = por %p47, %p48
      %p50 = scmp.ne.s32.totalorder %s36, %s37
      %p51 = scmp.eq.s32.totalorder %s29, 1
      %p52 = por %p50, %p51
      %p54 = scmp.ne.s32.totalorder %s37, %s53
      %p55 = scmp.eq.s32.totalorder %s29, 0
      %p56 = por %p54, %p55
      %s57 = ssub.s32 %s23, %s30
      %p58 = scmp.eq.s32.totalorder %s57, 0
      %s60 = sadd.s32 %s59, 1
      %s61 = scalar_select %p58, %s59, %s60
      %p64 = pneg %p58
      %p65 = scmp.eq.s32.totalorder %s23, 1
      %p66 = por %p64, %p65
      %p67 = scmp.ne.s32.totalorder %s59, %s62
      %p68 = scmp.eq.s32.totalorder %s23, 0
      %p69 = por %p67, %p68
      %p70 = scmp.ne.s32.totalorder %s59, %s62
      %p71 = scmp.eq.s32.totalorder %s28, 1
      %p72 = por %p70, %p71
      %p73 = scmp.ne.s32.totalorder %s62, %s63
      %p74 = scmp.eq.s32.totalorder %s28, 0
      %p75 = por %p73, %p74
      %p76 = scmp.ne.s32.totalorder %s62, %s63
      %p77 = scmp.eq.s32.totalorder %s29, 1
      %p78 = por %p76, %p77
      %p80 = scmp.ne.s32.totalorder %s63, %s79
      %p81 = scmp.eq.s32.totalorder %s29, 0
      %p82 = por %p80, %p81
      %s84 = sadd.s32 %s83, 1
      %p87 = scmp.eq.s32.totalorder %s23, 1
      %p88 = scmp.ne.s32.totalorder %s83, %s85
      %p89 = scmp.eq.s32.totalorder %s23, 0
      %p90 = por %p88, %p89
      %p91 = scmp.ne.s32.totalorder %s83, %s85
      %p92 = scmp.eq.s32.totalorder %s28, 1
      %p93 = por %p91, %p92
      %p94 = scmp.ne.s32.totalorder %s85, %s86
      %p95 = scmp.eq.s32.totalorder %s28, 0
      %p96 = por %p94, %p95
      %p97 = scmp.ne.s32.totalorder %s85, %s86
      %p98 = scmp.eq.s32.totalorder %s29, 1
      %p99 = por %p97, %p98
      %p101 = scmp.ne.s32.totalorder %s86, %s100
      %p102 = scmp.eq.s32.totalorder %s29, 0
      %p103 = por %p101, %p102
      %s105 = sadd.s32 %s104, 1
      %p108 = scmp.eq.s32.totalorder %s23, 1
      %p109 = scmp.ne.s32.totalorder %s104, %s106
      %p110 = scmp.eq.s32.totalorder %s23, 0
      %p111 = por %p109, %p110
      %p112 = scmp.ne.s32.totalorder %s104, %s106
      %p113 = scmp.eq.s32.totalorder %s28, 1
      %p114 = por %p112, %p113
      %p115 = scmp.ne.s32.totalorder %s106, %s107
      %p116 = scmp.eq.s32.totalorder %s28, 0
      %p117 = por %p115, %p116
      %p118 = scmp.ne.s32.totalorder %s106, %s107
      %p119 = scmp.eq.s32.totalorder %s29, 1
      %p120 = por %p118, %p119
      %p122 = scmp.ne.s32.totalorder %s107, %s121
      %p123 = scmp.eq.s32.totalorder %s29, 0
      %p124 = por %p122, %p123
      %s126 = sadd.s32 %s125, 1
      %p129 = scmp.eq.s32.totalorder %s23, 1
      %p130 = scmp.ne.s32.totalorder %s125, %s127
      %p131 = scmp.eq.s32.totalorder %s23, 0
      %p132 = por %p130, %p131
      %p133 = scmp.ne.s32.totalorder %s125, %s127
      %p134 = scmp.eq.s32.totalorder %s28, 1
      %p135 = por %p133, %p134
      %p136 = scmp.ne.s32.totalorder %s127, %s128
      %p137 = scmp.eq.s32.totalorder %s28, 0
      %p138 = por %p136, %p137
      %p139 = scmp.ne.s32.totalorder %s127, %s128
      %p140 = scmp.eq.s32.totalorder %s29, 1
      %p141 = por %p139, %p140
      %p143 = scmp.ne.s32.totalorder %s128, %s142
      %p144 = scmp.eq.s32.totalorder %s29, 0
      %p145 = por %p143, %p144
      %s146 = ssub.s32 %s23, %s30
      %p147 = scmp.eq.s32.totalorder %s146, 0
      %s149 = sadd.s32 %s148, 1
      %s150 = scalar_select %p147, %s148, %s149
      %p153 = pneg %p147
      %p154 = scmp.eq.s32.totalorder %s23, 1
      %p155 = por %p153, %p154
      %p156 = scmp.ne.s32.totalorder %s148, %s151
      %p157 = scmp.eq.s32.totalorder %s23, 0
      %p158 = por %p156, %p157
      %p159 = scmp.ne.s32.totalorder %s148, %s151
      %p160 = scmp.eq.s32.totalorder %s28, 1
      %p161 = por %p159, %p160
      %p162 = scmp.ne.s32.totalorder %s151, %s152
      %p163 = scmp.eq.s32.totalorder %s28, 0
      %p164 = por %p162, %p163
      %p165 = scmp.ne.s32.totalorder %s151, %s152
      %p166 = scmp.eq.s32.totalorder %s29, 1
      %p167 = por %p165, %p166
      %p169 = scmp.ne.s32.totalorder %s152, %s168
      %p170 = scmp.eq.s32.totalorder %s29, 0
      %p171 = por %p169, %p170
      %s172 = ssub.s32 %s23, %s30
      %p173 = scmp.eq.s32.totalorder %s172, 0
      %s175 = sadd.s32 %s174, 1
      %s176 = scalar_select %p173, %s174, %s175
      %p179 = pneg %p173
      %p180 = scmp.eq.s32.totalorder %s23, 1
      %p181 = por %p179, %p180
      %p182 = scmp.ne.s32.totalorder %s174, %s177
      %p183 = scmp.eq.s32.totalorder %s23, 0
      %p184 = por %p182, %p183
      %p185 = scmp.ne.s32.totalorder %s174, %s177
      %p186 = scmp.eq.s32.totalorder %s28, 1
      %p187 = por %p185, %p186
      %p188 = scmp.ne.s32.totalorder %s177, %s178
      %p189 = scmp.eq.s32.totalorder %s28, 0
      %p190 = por %p188, %p189
      %p191 = scmp.ne.s32.totalorder %s177, %s178
      %p192 = scmp.eq.s32.totalorder %s29, 1
      %p193 = por %p191, %p192
      %p195 = scmp.ne.s32.totalorder %s178, %s194
      %p196 = scmp.eq.s32.totalorder %s29, 0
      %p197 = por %p195, %p196
      %p198 = scmp.le.s32.totalorder 1, %s23
      %p199 = scmp.lt.s32.totalorder %s23, 3
      %p200 = pnand %p198, %p199
      %p201 = pneg %p200
      // Predicated region
      $region9: #{tpu_custom_call.1} parent=5 // pred_check
        _
      $region10: #{tpu_custom_call.1} parent=5 // pred_check_branch
        %203 = sbr.rel (%p200) target = $region12
      $region11: #{tpu_custom_call.1} parent=5 // pred_region
        %s204 = ssub.s32 %s23, 1
        // Predicated region
        $region13: #{tpu_custom_call.1} parent=11 // pred_check
          %p205 = pneg %p96
        $region14: #{tpu_custom_call.1} parent=11 // pred_check_branch
          %207 = sbr.rel (%p205) target = $region16
        $region15: #{tpu_custom_call.1} parent=11 // pred_region
          %s209 = ssub.s32 512, 512
          %210 = vsyncadd [#allocation6], %s209
          %s211 = sshll.u32 [#allocation7], 4
          %s212 = int_to_ptr.vmem [resolvable:$true] %s211
          %217 = dma.hbm_to_vmem [thread:$0]  %s2, 512, %s212, [#allocation6], 128, 128, 8
        $region16: #{tpu_custom_call.1} parent=11 // pred_fallthru
          _
        // Predicated region
        $region17: #{tpu_custom_call.1} parent=11 // pred_check
          %p218 = pneg %p117
        $region18: #{tpu_custom_call.1} parent=11 // pred_check_branch
          %220 = sbr.rel (%p218) target = $region20
        $region19: #{tpu_custom_call.1} parent=11 // pred_region
          %s222 = ssub.s32 512, 512
          %223 = vsyncadd [#allocation9], %s222
          %s224 = sshll.u32 [#allocation8], 4
          %s225 = int_to_ptr.vmem [resolvable:$true] %s224
          %230 = dma.hbm_to_vmem [thread:$0]  %s3, 512, %s225, [#allocation9], 128, 128, 8
        $region20: #{tpu_custom_call.1} parent=11 // pred_fallthru
          _
        // Predicated region
        $region21: #{tpu_custom_call.1} parent=11 // pred_check
          %p231 = pneg %p138
        $region22: #{tpu_custom_call.1} parent=11 // pred_check_branch
          %233 = sbr.rel (%p231) target = $region24
        $region23: #{tpu_custom_call.1} parent=11 // pred_region
          %s235 = ssub.s32 512, 512
          %236 = vsyncadd [#allocation9], %s235
          %s237 = sshll.u32 [#allocation10], 4
          %s238 = int_to_ptr.vmem [resolvable:$true] %s237
          %243 = dma.hbm_to_vmem [thread:$0]  %s4, 512, %s238, [#allocation9], 128, 128, 8
        $region24: #{tpu_custom_call.1} parent=11 // pred_fallthru
          _
      $region12: #{tpu_custom_call.1} parent=5 // pred_fallthru
        _
      %p244 = scmp.lt.s32.totalorder %s23, 2
      // Predicated region
      $region25: #{tpu_custom_call.1} parent=5 // pred_check
        %p245 = pneg %p244
      $region26: #{tpu_custom_call.1} parent=5 // pred_check_branch
        %247 = sbr.rel (%p245) target = $region28
      $region27: #{tpu_custom_call.1} parent=5 // pred_region
        // Predicated region
        $region29: #{tpu_custom_call.1} parent=27 // pred_check
          %p248 = pneg %p43
        $region30: #{tpu_custom_call.1} parent=27 // pred_check_branch
          %250 = sbr.rel (%p248) target = $region32
        $region31: #{tpu_custom_call.1} parent=27 // pred_region
          %s251 = sand.u32 %s33, 1
          %s252 = scalar_lea.sflag [#allocation3], %s251
          %s253 = sand.u32 %s33, 1
          %s254 = smul.addr %s253, 8
          %s255 = scalar_lea.vmem [#allocation2], %s254
          %s257 = ssub.s32 128, 128
          %258 = vsyncadd %s252, %s257
          %s259 = smul.addr %s23, 128
          %s260 = scalar_lea.hbm %s0, %s259
          %s262 = sshll.u32 %s255, 4
          %s263 = int_to_ptr.vmem [resolvable:$true] %s262
          %265 = dma.hbm_to_vmem [thread:$0]  %s260, 128, %s263, %s252
        $region32: #{tpu_custom_call.1} parent=27 // pred_fallthru
          _
        // Predicated region
        $region33: #{tpu_custom_call.1} parent=27 // pred_check
          %p266 = pneg %p69
        $region34: #{tpu_custom_call.1} parent=27 // pred_check_branch
          %268 = sbr.rel (%p266) target = $region36
        $region35: #{tpu_custom_call.1} parent=27 // pred_region
          %s269 = sand.u32 %s23, 1
          %s270 = scalar_lea.sflag [#allocation6], %s269
          %s271 = sand.u32 %s59, 1
          %s272 = smul.addr %s271, 64
          %s273 = scalar_lea.vmem [#allocation5], %s272
          %s274 = smul.u32 8, %s23
          %s276 = ssub.s32 1024, 1024
          %277 = vsyncadd %s270, %s276
          %s278 = smul.addr %s274, 128
          %s279 = scalar_lea.hbm %s1, %s278
          %s280 = sshll.u32 %s273, 4
          %s281 = int_to_ptr.vmem [resolvable:$true] %s280
          %286 = dma.hbm_to_vmem [thread:$0]  %s279, 1024, %s281, %s270, 128, 128, 8
        $region36: #{tpu_custom_call.1} parent=27 // pred_fallthru
          _
      $region28: #{tpu_custom_call.1} parent=5 // pred_fallthru
        _
      %p287 = scmp.le.s32.totalorder 1, %s23
      %p288 = scmp.lt.s32.totalorder %s23, 3
      %p289 = pnand %p287, %p288
      %p290 = pneg %p289
      // Predicated region
      $region37: #{tpu_custom_call.1} parent=5 // pred_check
        _
      $region38: #{tpu_custom_call.1} parent=5 // pred_check_branch
        %292 = sbr.rel (%p289) target = $region40
      $region39: #{tpu_custom_call.1} parent=5 // pred_region
        %s293 = ssub.s32 %s23, 1
        %s294 = sand.u32 %s36, 1
        %s295 = scalar_lea.sflag [#allocation3], %s294
        %s296 = sand.u32 %s36, 1
        %s297 = smul.addr %s296, 8
        %s298 = scalar_lea.vmem [#allocation2], %s297
        // Predicated region
        $region41: #{tpu_custom_call.1} parent=39 // pred_check
          %p299 = pneg %p49
        $region42: #{tpu_custom_call.1} parent=39 // pred_check_branch
          %301 = sbr.rel (%p299) target = $region44
        $region43: #{tpu_custom_call.1} parent=39 // pred_region
          %302 = dma.done %s295, 128
        $region44: #{tpu_custom_call.1} parent=39 // pred_fallthru
          _
        %s303 = sand.u32 %s28, 1
        %s304 = scalar_lea.sflag [#allocation6], %s303
        %s305 = sand.u32 %s62, 1
        %s306 = smul.addr %s305, 64
        %s307 = scalar_lea.vmem [#allocation5], %s306
        // Predicated region
        $region45: #{tpu_custom_call.1} parent=39 // pred_check
          %p308 = pneg %p75
        $region46: #{tpu_custom_call.1} parent=39 // pred_check_branch
          %310 = sbr.rel (%p308) target = $region48
        $region47: #{tpu_custom_call.1} parent=39 // pred_region
          %311 = dma.done %s304, 1024
        $region48: #{tpu_custom_call.1} parent=39 // pred_fallthru
          _
        // Predicated region
        $region49: #{tpu_custom_call.1} parent=39 // pred_check
          %p312 = pneg %p96
        $region50: #{tpu_custom_call.1} parent=39 // pred_check_branch
          %314 = sbr.rel (%p312) target = $region52
        $region51: #{tpu_custom_call.1} parent=39 // pred_region
          %315 = dma.done [#allocation6], 512
        $region52: #{tpu_custom_call.1} parent=39 // pred_fallthru
          _
        // Predicated region
        $region53: #{tpu_custom_call.1} parent=39 // pred_check
          %p316 = pneg %p117
        $region54: #{tpu_custom_call.1} parent=39 // pred_check_branch
          %318 = sbr.rel (%p316) target = $region56
        $region55: #{tpu_custom_call.1} parent=39 // pred_region
          %319 = dma.done [#allocation9], 512
        $region56: #{tpu_custom_call.1} parent=39 // pred_fallthru
          _
        // Predicated region
        $region57: #{tpu_custom_call.1} parent=39 // pred_check
          %p320 = pneg %p138
        $region58: #{tpu_custom_call.1} parent=39 // pred_check_branch
          %322 = sbr.rel (%p320) target = $region60
        $region59: #{tpu_custom_call.1} parent=39 // pred_region
          %323 = dma.done [#allocation9], 512
        $region60: #{tpu_custom_call.1} parent=39 // pred_fallthru
          _
        %s324 = sand.u32 %s36, 1
        %s325 = scalar_lea.sflag [#allocation3], %s324
        %s326 = sand.u32 %s36, 1
        %s327 = smul.addr %s326, 8
        %s328 = scalar_lea.vmem [#allocation2], %s327
        %p329 = pneg %p49
        %p330 = pneg %p46
        %s331 = sand.u32 %s28, 1
        %s332 = scalar_lea.sflag [#allocation6], %s331
        %s333 = sand.u32 %s62, 1
        %s334 = smul.addr %s333, 64
        %s335 = scalar_lea.vmem [#allocation5], %s334
        %p336 = pneg %p75
        %p337 = pneg %p72
        %p338 = pneg %p96
        %p339 = pneg %p93
        %p340 = pneg %p117
        %p341 = pneg %p114
        %p342 = pneg %p138
        %p343 = pneg %p135
        %p344 = pneg %p164
        %p345 = pneg %p161
        %s346 = sand.u32 %s151, 1
        %s347 = scalar_lea.sflag [#allocation4], %s346
        %s348 = sand.u32 %s151, 1
        %s349 = smul.addr %s348, 8
        %s350 = scalar_lea.vmem [#allocation11], %s349
        %p351 = pneg %p190
        %p352 = pneg %p187
        %p353 = scmp.lt.s32.totalorder %s28, 1
        %s354 = scalar_select %p353, %s28, 1
        %s355 = smul.addr %s354, 8
        %s356 = scalar_lea.vmem %s6, %s355
        %s357 = smul.u32 8, %s28
        %p358 = scmp.lt.s32.totalorder %s28, 1
        %s359 = scalar_select %p358, %s28, 1
        %s360 = smul.addr %s359, 8
        %s361 = scalar_lea.vmem %s6, %s360
        %v362 = vld [vmem:[%s298] sm:$0xff]
        %v363 = vld [vmem:[%s307] sm:$0xff]
        %v364 = vld [vmem:[%s307 + $0x8] sm:$0xff]
        %v365 = vld [vmem:[%s307 + $0x10] sm:$0xff]
        %v366 = vld [vmem:[%s307 + $0x18] sm:$0xff]
        %v367 = vld [vmem:[%s307 + $0x20] sm:$0xff]
        %v368 = vld [vmem:[%s307 + $0x28] sm:$0xff]
        %v369 = vld [vmem:[%s307 + $0x30] sm:$0xff]
        %v370 = vld [vmem:[%s307 + $0x38] sm:$0xff]
        %v371 = vld [vmem:[#allocation7] sm:$0xff]
        %v372 = vld [vmem:[#allocation7 + $0x8] sm:$0xff]
        %v373 = vld [vmem:[#allocation7 + $0x10] sm:$0xff]
        %v374 = vld [vmem:[#allocation7 + $0x18] sm:$0xff]
        %vm375 = vcmask 261120
        %v377 = vsel %vm375, %v362, 0
        %379 = vmatprep.subr.mxu0 0.0
        %380 = vmatpush1.msra.mxu0 %v371
        %381 = vmatprep.subr.mxu0 0.0
        %382 = vmatpush1.msra.mxu0 %v372
        %383 = vmatprep.subr.mxu0 0.0
        %384 = vmatpush1.msra.mxu0 %v373
        %385 = vmatprep.subr.mxu0 0.0
        %386 = vmatpush1.msra.mxu0 %v374
        %387 = vmatprep.subr.mxu0 0.0
        %388 = vmatpush1.msra.mxu0 0.0
        %389 = vmatprep.subr.mxu0 0.0
        %390 = vmatpush1.msra.mxu0 0.0
        %391 = vmatprep.subr.mxu0 0.0
        %392 = vmatpush1.msra.mxu0 0.0
        %393 = vmatprep.subr.mxu0 0.0
        %394 = vmatpush1.msra.mxu0 0.0
        %395 = vmatprep.subr.mxu0 0.0
        %396 = vmatpush1.msra.mxu0 0.0
        %397 = vmatprep.subr.mxu0 0.0
        %398 = vmatpush1.msra.mxu0 0.0
        %399 = vmatprep.subr.mxu0 0.0
        %400 = vmatpush1.msra.mxu0 0.0
        %401 = vmatprep.subr.mxu0 0.0
        %402 = vmatpush1.msra.mxu0 0.0
        %403 = vmatprep.subr.mxu0 0.0
        %404 = vmatpush1.msra.mxu0 0.0
        %405 = vmatprep.subr.mxu0 0.0
        %406 = vmatpush1.msra.mxu0 0.0
        %407 = vmatprep.subr.mxu0 0.0
        %408 = vmatpush1.msra.mxu0 0.0
        %409 = vmatprep.subr.mxu0 0.0
        %410 = vmatpush1.msra.mxu0 0.0
        %411 = vmatprep.subr.mxu0 0.0
        %412 = vmatpush1.msra.mxu0 0.0
        %413 = vmatprep.subr.mxu0 0.0
        %414 = vmatpush1.msra.mxu0 0.0
        %415 = vmatprep.subr.mxu0 0.0
        %416 = vmatpush1.msra.mxu0 0.0
        %417 = vmatprep.subr.mxu0 0.0
        %418 = vmatpush1.msra.mxu0 0.0
        %419 = vmatprep.subr.mxu0 0.0
        %420 = vmatpush1.msra.mxu0 0.0
        %421 = vmatprep.subr.mxu0 0.0
        %422 = vmatpush1.msra.mxu0 0.0
        %423 = vmatprep.subr.mxu0 0.0
        %424 = vmatpush1.msra.mxu0 0.0
        %425 = vmatprep.subr.mxu0 0.0
        %426 = vmatpush1.msra.mxu0 0.0
        %427 = vmatprep.subr.mxu0 0.0
        %428 = vmatpush1.msra.mxu0 0.0
        %429 = vmatprep.subr.mxu0 0.0
        %430 = vmatpush1.msra.mxu0 0.0
        %431 = vmatprep.subr.mxu0 0.0
        %432 = vmatpush1.msra.mxu0 0.0
        %433 = vmatprep.subr.mxu0 0.0
        %434 = vmatpush1.msra.mxu0 0.0
        %435 = vmatprep.subr.mxu0 0.0
        %436 = vmatpush1.msra.mxu0 0.0
        %437 = vmatprep.subr.mxu0 0.0
        %438 = vmatpush1.msra.mxu0 0.0
        %439 = vmatprep.subr.mxu0 0.0
        %440 = vmatpush1.msra.mxu0 0.0
        %441 = vmatprep.subr.mxu0 0.0
        %442 = vmatpush1.msra.mxu0 0.0
        %443 = vmatprep.mubr.f32.mxu0 0.0
        %444 = vmatmul.mubr.f32.gmra.mrb[0].mxu0 %v377
        %v445 = vpop.f32.mrb[0].mxu0
        %v446 = vadd.f32 0.0, %v445
        %v447 = vpop.f32.mrb[0].mxu0
        %448 = vdwg.mxu0
        %v450 = vcombine.high %v446, %v446
        %v452 = vunpack.c.l.s4 1966171168
        %v453 = vunpack.c.0.s8 %v452
        %v454 = vlaneseq
        %v455 = vshrl.u32 %v454, 7
        %v456 = vsub.s32 %v453, %v455
        %v457 = vrot.slane %v446, %v456
        %v459 = vunpack.c.l.s4 1966171168
        %v460 = vunpack.c.0.s8 %v459
        %v461 = vlaneseq
        %v462 = vshrl.u32 %v461, 7
        %v463 = vsub.s32 %v460, %v462
        %v464 = vrot.slane %v450, %v463
        %v465 = vcombine.high %v457, %v457
        %v466 = vcombine.high %v464, %v464
        %v468 = vunpack.c.l.s4 1966171168
        %v469 = vunpack.c.0.s8 %v468
        %v470 = vlaneseq
        %v471 = vshrl.u32 %v470, 7
        %v472 = vsub.s32 %v469, %v471
        %v473 = vrot.slane %v457, %v472
        %v475 = vunpack.c.l.s4 1966171168
        %v476 = vunpack.c.0.s8 %v475
        %v477 = vlaneseq
        %v478 = vshrl.u32 %v477, 7
        %v479 = vsub.s32 %v476, %v478
        %v480 = vrot.slane %v464, %v479
        %v482 = vunpack.c.l.s4 1966171168
        %v483 = vunpack.c.0.s8 %v482
        %v484 = vlaneseq
        %v485 = vshrl.u32 %v484, 7
        %v486 = vsub.s32 %v483, %v485
        %v487 = vrot.slane %v465, %v486
        %v489 = vunpack.c.l.s4 1966171168
        %v490 = vunpack.c.0.s8 %v489
        %v491 = vlaneseq
        %v492 = vshrl.u32 %v491, 7
        %v493 = vsub.s32 %v490, %v492
        %v494 = vrot.slane %v466, %v493
        %v495 = vcombine.high %v473, %v473
        %v496 = vcombine.high %v480, %v480
        %v497 = vcombine.high %v487, %v487
        %v498 = vcombine.high %v494, %v494
        %v499 = vlaneseq
        %v500 = vshrl.u32 %v499, 7
        %v501 = vsub.s32 0, %v500
        %v502 = vrot.slane %v473, %v501
        %v503 = vlaneseq
        %v504 = vshrl.u32 %v503, 7
        %v505 = vsub.s32 0, %v504
        %v506 = vrot.slane %v487, %v505
        %v507 = vlaneseq
        %v508 = vshrl.u32 %v507, 7
        %v509 = vsub.s32 0, %v508
        %v510 = vrot.slane %v495, %v509
        %v511 = vlaneseq
        %v512 = vshrl.u32 %v511, 7
        %v513 = vsub.s32 0, %v512
        %v514 = vrot.slane %v497, %v513
        %v515 = vlaneseq
        %v516 = vshrl.u32 %v515, 7
        %v517 = vsub.s32 0, %v516
        %v518 = vrot.slane %v480, %v517
        %v519 = vlaneseq
        %v520 = vshrl.u32 %v519, 7
        %v521 = vsub.s32 0, %v520
        %v522 = vrot.slane %v494, %v521
        %v523 = vlaneseq
        %v524 = vshrl.u32 %v523, 7
        %v525 = vsub.s32 0, %v524
        %v526 = vrot.slane %v496, %v525
        %v527 = vlaneseq
        %v528 = vshrl.u32 %v527, 7
        %v529 = vsub.s32 0, %v528
        %v530 = vrot.slane %v498, %v529
        %v539 = vmul.f32 %v363, %v502
        %v540 = vmul.f32 %v364, %v506
        %v541 = vmul.f32 %v365, %v510
        %v542 = vmul.f32 %v366, %v514
        %v543 = vmul.f32 %v367, %v518
        %v544 = vmul.f32 %v368, %v522
        %v545 = vmul.f32 %v369, %v526
        %v546 = vmul.f32 %v370, %v530
        %v547 = vsel %vm375, %v539, 0.0
        %548 = vadd.xlane.f32.xlu0 %v547
        %v549 = vpop.xlane.xlu0 %548
        %v550 = vsel %vm375, %v540, 0.0
        %551 = vadd.xlane.f32.xlu0 %v550
        %v552 = vpop.xlane.xlu0 %551
        %v553 = vsel %vm375, %v541, 0.0
        %554 = vadd.xlane.f32.xlu0 %v553
        %v555 = vpop.xlane.xlu0 %554
        %v556 = vsel %vm375, %v542, 0.0
        %557 = vadd.xlane.f32.xlu0 %v556
        %v558 = vpop.xlane.xlu0 %557
        %v559 = vsel %vm375, %v543, 0.0
        %560 = vadd.xlane.f32.xlu0 %v559
        %v561 = vpop.xlane.xlu0 %560
        %v562 = vsel %vm375, %v544, 0.0
        %563 = vadd.xlane.f32.xlu0 %v562
        %v564 = vpop.xlane.xlu0 %563
        %v565 = vsel %vm375, %v545, 0.0
        %566 = vadd.xlane.f32.xlu0 %v565
        %v567 = vpop.xlane.xlu0 %566
        %v568 = vsel %vm375, %v546, 0.0
        %569 = vadd.xlane.f32.xlu0 %v568
        %v570 = vpop.xlane.xlu0 %569
        %v579 = vlaneseq
        %v580 = vand.u32 %v579, 127
        %v581 = vlaneseq
        %v582 = vshrl.u32 %v581, 7
        %v583 = vsub.s32 %v580, %v582
        %v584 = vrot.slane %v549, %v583
        %v585 = vlaneseq
        %v586 = vshrl.u32 %v585, 7
        %v587 = vsub.s32 %v580, %v586
        %v588 = vrot.slane %v552, %v587
        %v589 = vlaneseq
        %v590 = vshrl.u32 %v589, 7
        %v591 = vsub.s32 %v580, %v590
        %v592 = vrot.slane %v555, %v591
        %v593 = vlaneseq
        %v594 = vshrl.u32 %v593, 7
        %v595 = vsub.s32 %v580, %v594
        %v596 = vrot.slane %v558, %v595
        %v597 = vlaneseq
        %v598 = vshrl.u32 %v597, 7
        %v599 = vsub.s32 %v580, %v598
        %v600 = vrot.slane %v561, %v599
        %v601 = vlaneseq
        %v602 = vshrl.u32 %v601, 7
        %v603 = vsub.s32 %v580, %v602
        %v604 = vrot.slane %v564, %v603
        %v605 = vlaneseq
        %v606 = vshrl.u32 %v605, 7
        %v607 = vsub.s32 %v580, %v606
        %v608 = vrot.slane %v567, %v607
        %v609 = vlaneseq
        %v610 = vshrl.u32 %v609, 7
        %v611 = vsub.s32 %v580, %v610
        %v612 = vrot.slane %v570, %v611
        %vm613 = vcmask 1041409
        %v614 = vsel %vm613, %v588, %v584
        %vm615 = vcmask 1042434
        %v616 = vsel %vm615, %v592, %v614
        %vm617 = vcmask 1043459
        %v618 = vsel %vm617, %v596, %v616
        %vm619 = vcmask 1044484
        %v620 = vsel %vm619, %v600, %v618
        %vm621 = vcmask 1045509
        %v622 = vsel %vm621, %v604, %v620
        %vm623 = vcmask 1046534
        %v624 = vsel %vm623, %v608, %v622
        %vm625 = vcmask 1047559
        %v626 = vsel %vm625, %v612, %v624
        %vm628 = vcmask 64512
        %v629 = vsel %vm628, %v626, -inf
        %630 = vmax.xlane.f32.xlu0 %v629
        %v631 = vpop.xlane.xlu0 %630
        %v633 = vlaneseq
        %v634 = vshrl.u32 %v633, 7
        %v635 = vsub.s32 0, %v634
        %v636 = vrot.slane %v631, %v635
        %v637 = vlaneseq
        %v638 = vshrl.u32 %v637, 7
        %v639 = vsub.s32 1, %v638
        %v640 = vrot.slane %v631, %v639
        %v641 = vlaneseq
        %v642 = vshrl.u32 %v641, 7
        %v643 = vsub.s32 2, %v642
        %v644 = vrot.slane %v631, %v643
        %v645 = vlaneseq
        %v646 = vshrl.u32 %v645, 7
        %v647 = vsub.s32 3, %v646
        %v648 = vrot.slane %v631, %v647
        %v649 = vlaneseq
        %v650 = vshrl.u32 %v649, 7
        %v651 = vsub.s32 4, %v650
        %v652 = vrot.slane %v631, %v651
        %v653 = vlaneseq
        %v654 = vshrl.u32 %v653, 7
        %v655 = vsub.s32 5, %v654
        %v656 = vrot.slane %v631, %v655
        %v657 = vlaneseq
        %v658 = vshrl.u32 %v657, 7
        %v659 = vsub.s32 6, %v658
        %v660 = vrot.slane %v631, %v659
        %v661 = vlaneseq
        %v662 = vshrl.u32 %v661, 7
        %v663 = vsub.s32 7, %v662
        %v664 = vrot.slane %v631, %v663
        %v673 = vsub.f32 %v549, %v636
        %v674 = vsub.f32 %v552, %v640
        %v675 = vsub.f32 %v555, %v644
        %v676 = vsub.f32 %v558, %v648
        %v677 = vsub.f32 %v561, %v652
        %v678 = vsub.f32 %v564, %v656
        %v679 = vsub.f32 %v567, %v660
        %v680 = vsub.f32 %v570, %v664
        %v681 = vmul.f32 %v673, 1.442695
        %v682 = vpow.pop %v681
        %v683 = vmul.f32 %v674, 1.442695
        %v684 = vpow.pop %v683
        %v685 = vmul.f32 %v675, 1.442695
        %v686 = vpow.pop %v685
        %v687 = vmul.f32 %v676, 1.442695
        %v688 = vpow.pop %v687
        %v689 = vmul.f32 %v677, 1.442695
        %v690 = vpow.pop %v689
        %v691 = vmul.f32 %v678, 1.442695
        %v692 = vpow.pop %v691
        %v693 = vmul.f32 %v679, 1.442695
        %v694 = vpow.pop %v693
        %v695 = vmul.f32 %v680, 1.442695
        %v696 = vpow.pop %v695
        %705 = vset.pattern.permute.xlu0 0
        %706 = vperm.xlu0 %705, %v682
        %v707 = vpop.permute.xlu0 %706
        %708 = vset.pattern.permute.xlu0 0
        %709 = vperm.xlu0 %708, %v684
        %v710 = vpop.permute.xlu0 %709
        %711 = vset.pattern.permute.xlu0 0
        %712 = vperm.xlu0 %711, %v686
        %v713 = vpop.permute.xlu0 %712
        %714 = vset.pattern.permute.xlu0 0
        %715 = vperm.xlu0 %714, %v688
        %v716 = vpop.permute.xlu0 %715
        %717 = vset.pattern.permute.xlu0 0
        %718 = vperm.xlu0 %717, %v690
        %v719 = vpop.permute.xlu0 %718
        %720 = vset.pattern.permute.xlu0 0
        %721 = vperm.xlu0 %720, %v692
        %v722 = vpop.permute.xlu0 %721
        %723 = vset.pattern.permute.xlu0 0
        %724 = vperm.xlu0 %723, %v694
        %v725 = vpop.permute.xlu0 %724
        %726 = vset.pattern.permute.xlu0 0
        %727 = vperm.xlu0 %726, %v696
        %v728 = vpop.permute.xlu0 %727
        %v729 = vlaneseq
        %v730 = vshrl.u32 %v729, 7
        %v731 = vsub.s32 %v580, %v730
        %v732 = vrot.slane %v707, %v731
        %v733 = vlaneseq
        %v734 = vshrl.u32 %v733, 7
        %v735 = vsub.s32 %v580, %v734
        %v736 = vrot.slane %v710, %v735
        %v737 = vlaneseq
        %v738 = vshrl.u32 %v737, 7
        %v739 = vsub.s32 %v580, %v738
        %v740 = vrot.slane %v713, %v739
        %v741 = vlaneseq
        %v742 = vshrl.u32 %v741, 7
        %v743 = vsub.s32 %v580, %v742
        %v744 = vrot.slane %v716, %v743
        %v745 = vlaneseq
        %v746 = vshrl.u32 %v745, 7
        %v747 = vsub.s32 %v580, %v746
        %v748 = vrot.slane %v719, %v747
        %v749 = vlaneseq
        %v750 = vshrl.u32 %v749, 7
        %v751 = vsub.s32 %v580, %v750
        %v752 = vrot.slane %v722, %v751
        %v753 = vlaneseq
        %v754 = vshrl.u32 %v753, 7
        %v755 = vsub.s32 %v580, %v754
        %v756 = vrot.slane %v725, %v755
        %v757 = vlaneseq
        %v758 = vshrl.u32 %v757, 7
        %v759 = vsub.s32 %v580, %v758
        %v760 = vrot.slane %v728, %v759
        %v761 = vsel %vm613, %v736, %v732
        %v762 = vsel %vm615, %v740, %v761
        %v763 = vsel %vm617, %v744, %v762
        %v764 = vsel %vm619, %v748, %v763
        %v765 = vsel %vm621, %v752, %v764
        %v766 = vsel %vm623, %v756, %v765
        %v767 = vsel %vm625, %v760, %v766
        %v769 = vsel %vm628, %v767, 0.0
        %770 = vadd.xlane.f32.xlu0 %v769
        %v771 = vpop.xlane.xlu0 %770
        %v773 = vlaneseq
        %v774 = vshrl.u32 %v773, 7
        %v775 = vsub.s32 0, %v774
        %v776 = vrot.slane %v771, %v775
        %v777 = vlaneseq
        %v778 = vshrl.u32 %v777, 7
        %v779 = vsub.s32 1, %v778
        %v780 = vrot.slane %v771, %v779
        %v781 = vlaneseq
        %v782 = vshrl.u32 %v781, 7
        %v783 = vsub.s32 2, %v782
        %v784 = vrot.slane %v771, %v783
        %v785 = vlaneseq
        %v786 = vshrl.u32 %v785, 7
        %v787 = vsub.s32 3, %v786
        %v788 = vrot.slane %v771, %v787
        %v789 = vlaneseq
        %v790 = vshrl.u32 %v789, 7
        %v791 = vsub.s32 4, %v790
        %v792 = vrot.slane %v771, %v791
        %v793 = vlaneseq
        %v794 = vshrl.u32 %v793, 7
        %v795 = vsub.s32 5, %v794
        %v796 = vrot.slane %v771, %v795
        %v797 = vlaneseq
        %v798 = vshrl.u32 %v797, 7
        %v799 = vsub.s32 6, %v798
        %v800 = vrot.slane %v771, %v799
        %v801 = vlaneseq
        %v802 = vshrl.u32 %v801, 7
        %v803 = vsub.s32 7, %v802
        %v804 = vrot.slane %v771, %v803
        %v813 = vrcp.pop %v776
        %v814 = vmul.f32 %v682, %v813
        %v815 = vrcp.pop %v780
        %v816 = vmul.f32 %v684, %v815
        %v817 = vrcp.pop %v784
        %v818 = vmul.f32 %v686, %v817
        %v819 = vrcp.pop %v788
        %v820 = vmul.f32 %v688, %v819
        %v821 = vrcp.pop %v792
        %v822 = vmul.f32 %v690, %v821
        %v823 = vrcp.pop %v796
        %v824 = vmul.f32 %v692, %v823
        %v825 = vrcp.pop %v800
        %v826 = vmul.f32 %v694, %v825
        %v827 = vrcp.pop %v804
        %v828 = vmul.f32 %v696, %v827
        %830 = vset.pattern.permute.xlu0 0
        %831 = vperm.xlu0 %830, %v814
        %v832 = vpop.permute.xlu0 %831
        %835 = vset.pattern.permute.xlu0 0
        %836 = vperm.xlu0 %835, %v816
        %v837 = vpop.permute.xlu0 %836
        %840 = vset.pattern.permute.xlu0 0
        %841 = vperm.xlu0 %840, %v818
        %v842 = vpop.permute.xlu0 %841
        %845 = vset.pattern.permute.xlu0 0
        %846 = vperm.xlu0 %845, %v820
        %v847 = vpop.permute.xlu0 %846
        %850 = vset.pattern.permute.xlu0 0
        %851 = vperm.xlu0 %850, %v822
        %v852 = vpop.permute.xlu0 %851
        %855 = vset.pattern.permute.xlu0 0
        %856 = vperm.xlu0 %855, %v824
        %v857 = vpop.permute.xlu0 %856
        %860 = vset.pattern.permute.xlu0 0
        %861 = vperm.xlu0 %860, %v826
        %v862 = vpop.permute.xlu0 %861
        %865 = vset.pattern.permute.xlu0 0
        %866 = vperm.xlu0 %865, %v828
        %v867 = vpop.permute.xlu0 %866
        %v869 = vmul.f32 %v832, %v363
        %v870 = vmul.f32 %v837, %v364
        %v871 = vmul.f32 %v842, %v365
        %v872 = vmul.f32 %v847, %v366
        %v873 = vmul.f32 %v852, %v367
        %v874 = vmul.f32 %v857, %v368
        %v875 = vmul.f32 %v862, %v369
        %v876 = vmul.f32 %v867, %v370
        %v877 = vsel %vm375, %v869, 0.0
        %v878 = vrot.slane %v877, 4
        %v879 = vadd.f32 %v877, %v878
        %v880 = vrot.slane %v879, 2
        %v881 = vadd.f32 %v879, %v880
        %v882 = vrot.slane %v881, 1
        %v883 = vadd.f32 %v881, %v882
        %v884 = vsel %vm375, %v870, 0.0
        %v885 = vrot.slane %v884, 4
        %v886 = vadd.f32 %v884, %v885
        %v887 = vrot.slane %v886, 2
        %v888 = vadd.f32 %v886, %v887
        %v889 = vrot.slane %v888, 1
        %v890 = vadd.f32 %v888, %v889
        %v891 = vsel %vm375, %v871, 0.0
        %v892 = vrot.slane %v891, 4
        %v893 = vadd.f32 %v891, %v892
        %v894 = vrot.slane %v893, 2
        %v895 = vadd.f32 %v893, %v894
        %v896 = vrot.slane %v895, 1
        %v897 = vadd.f32 %v895, %v896
        %v898 = vsel %vm375, %v872, 0.0
        %v899 = vrot.slane %v898, 4
        %v900 = vadd.f32 %v898, %v899
        %v901 = vrot.slane %v900, 2
        %v902 = vadd.f32 %v900, %v901
        %v903 = vrot.slane %v902, 1
        %v904 = vadd.f32 %v902, %v903
        %v905 = vsel %vm375, %v873, 0.0
        %v906 = vrot.slane %v905, 4
        %v907 = vadd.f32 %v905, %v906
        %v908 = vrot.slane %v907, 2
        %v909 = vadd.f32 %v907, %v908
        %v910 = vrot.slane %v909, 1
        %v911 = vadd.f32 %v909, %v910
        %v912 = vsel %vm375, %v874, 0.0
        %v913 = vrot.slane %v912, 4
        %v914 = vadd.f32 %v912, %v913
        %v915 = vrot.slane %v914, 2
        %v916 = vadd.f32 %v914, %v915
        %v917 = vrot.slane %v916, 1
        %v918 = vadd.f32 %v916, %v917
        %v919 = vsel %vm375, %v875, 0.0
        %v920 = vrot.slane %v919, 4
        %v921 = vadd.f32 %v919, %v920
        %v922 = vrot.slane %v921, 2
        %v923 = vadd.f32 %v921, %v922
        %v924 = vrot.slane %v923, 1
        %v925 = vadd.f32 %v923, %v924
        %v926 = vsel %vm375, %v876, 0.0
        %v927 = vrot.slane %v926, 4
        %v928 = vadd.f32 %v926, %v927
        %v929 = vrot.slane %v928, 2
        %v930 = vadd.f32 %v928, %v929
        %v931 = vrot.slane %v930, 1
        %v932 = vadd.f32 %v930, %v931
        %v933 = vld [vmem:[#allocation8] sm:$0xff]
        %v934 = vld [vmem:[#allocation8 + $0x8] sm:$0xff]
        %v935 = vld [vmem:[#allocation8 + $0x10] sm:$0xff]
        %v936 = vld [vmem:[#allocation8 + $0x18] sm:$0xff]
        %v937 = vld [vmem:[#allocation10] sm:$0xff]
        %v938 = vld [vmem:[#allocation10 + $0x8] sm:$0xff]
        %v939 = vld [vmem:[#allocation10 + $0x10] sm:$0xff]
        %v940 = vld [vmem:[#allocation10 + $0x18] sm:$0xff]
        %941 = vmatprep.subr.mxu0 0.0
        %942 = vmatpush1.msra.mxu0 %v937
        %943 = vmatprep.subr.mxu0 0.0
        %944 = vmatpush1.msra.mxu0 %v938
        %945 = vmatprep.subr.mxu0 0.0
        %946 = vmatpush1.msra.mxu0 %v939
        %947 = vmatprep.subr.mxu0 0.0
        %948 = vmatpush1.msra.mxu0 %v940
        %949 = vmatprep.subr.mxu0 0.0
        %950 = vmatpush1.msra.mxu0 0.0
        %951 = vmatprep.subr.mxu0 0.0
        %952 = vmatpush1.msra.mxu0 0.0
        %953 = vmatprep.subr.mxu0 0.0
        %954 = vmatpush1.msra.mxu0 0.0
        %955 = vmatprep.subr.mxu0 0.0
        %956 = vmatpush1.msra.mxu0 0.0
        %957 = vmatprep.subr.mxu0 0.0
        %958 = vmatpush1.msra.mxu0 0.0
        %959 = vmatprep.subr.mxu0 0.0
        %960 = vmatpush1.msra.mxu0 0.0
        %961 = vmatprep.subr.mxu0 0.0
        %962 = vmatpush1.msra.mxu0 0.0
        %963 = vmatprep.subr.mxu0 0.0
        %964 = vmatpush1.msra.mxu0 0.0
        %965 = vmatprep.subr.mxu0 0.0
        %966 = vmatpush1.msra.mxu0 0.0
        %967 = vmatprep.subr.mxu0 0.0
        %968 = vmatpush1.msra.mxu0 0.0
        %969 = vmatprep.subr.mxu0 0.0
        %970 = vmatpush1.msra.mxu0 0.0
        %971 = vmatprep.subr.mxu0 0.0
        %972 = vmatpush1.msra.mxu0 0.0
        %973 = vmatprep.subr.mxu0 0.0
        %974 = vmatpush1.msra.mxu0 0.0
        %975 = vmatprep.subr.mxu0 0.0
        %976 = vmatpush1.msra.mxu0 0.0
        %977 = vmatprep.subr.mxu0 0.0
        %978 = vmatpush1.msra.mxu0 0.0
        %979 = vmatprep.subr.mxu0 0.0
        %980 = vmatpush1.msra.mxu0 0.0
        %981 = vmatprep.subr.mxu0 0.0
        %982 = vmatpush1.msra.mxu0 0.0
        %983 = vmatprep.subr.mxu0 0.0
        %984 = vmatpush1.msra.mxu0 0.0
        %985 = vmatprep.subr.mxu0 0.0
        %986 = vmatpush1.msra.mxu0 0.0
        %987 = vmatprep.subr.mxu0 0.0
        %988 = vmatpush1.msra.mxu0 0.0
        %989 = vmatprep.subr.mxu0 0.0
        %990 = vmatpush1.msra.mxu0 0.0
        %991 = vmatprep.subr.mxu0 0.0
        %992 = vmatpush1.msra.mxu0 0.0
        %993 = vmatprep.subr.mxu0 0.0
        %994 = vmatpush1.msra.mxu0 0.0
        %995 = vmatprep.subr.mxu0 0.0
        %996 = vmatpush1.msra.mxu0 0.0
        %997 = vmatprep.subr.mxu0 0.0
        %998 = vmatpush1.msra.mxu0 0.0
        %999 = vmatprep.subr.mxu0 0.0
        %1000 = vmatpush1.msra.mxu0 0.0
        %1001 = vmatprep.subr.mxu0 0.0
        %1002 = vmatpush1.msra.mxu0 0.0
        %1003 = vmatprep.subr.mxu0 0.0
        %1004 = vmatpush1.msra.mxu0 0.0
        %1005 = vmatprep.mubr.f32.mxu0 0.0
        %1006 = vmatmul.mubr.f32.gmra.mrb[0].mxu0 %v377
        %v1007 = vpop.f32.mrb[0].mxu0
        %v1008 = vadd.f32 0.0, %v1007
        %v1009 = vpop.f32.mrb[0].mxu0
        %1010 = vdwg.mxu0
        %v1019 = vsel %vm613, %v890, %v883
        %v1020 = vsel %vm615, %v897, %v1019
        %v1021 = vsel %vm617, %v904, %v1020
        %v1022 = vsel %vm619, %v911, %v1021
        %v1023 = vsel %vm621, %v918, %v1022
        %v1024 = vsel %vm623, %v925, %v1023
        %v1025 = vsel %vm625, %v932, %v1024
        %v1026 = vsel %vm375, %v1025, 0
        %1028 = vmatprep.subr.mxu0 0.0
        %1029 = vmatpush1.msra.mxu0 %v933
        %1030 = vmatprep.subr.mxu0 0.0
        %1031 = vmatpush1.msra.mxu0 %v934
        %1032 = vmatprep.subr.mxu0 0.0
        %1033 = vmatpush1.msra.mxu0 %v935
        %1034 = vmatprep.subr.mxu0 0.0
        %1035 = vmatpush1.msra.mxu0 %v936
        %1036 = vmatprep.subr.mxu0 0.0
        %1037 = vmatpush1.msra.mxu0 0.0
        %1038 = vmatprep.subr.mxu0 0.0
        %1039 = vmatpush1.msra.mxu0 0.0
        %1040 = vmatprep.subr.mxu0 0.0
        %1041 = vmatpush1.msra.mxu0 0.0
        %1042 = vmatprep.subr.mxu0 0.0
        %1043 = vmatpush1.msra.mxu0 0.0
        %1044 = vmatprep.subr.mxu0 0.0
        %1045 = vmatpush1.msra.mxu0 0.0
        %1046 = vmatprep.subr.mxu0 0.0
        %1047 = vmatpush1.msra.mxu0 0.0
        %1048 = vmatprep.subr.mxu0 0.0
        %1049 = vmatpush1.msra.mxu0 0.0
        %1050 = vmatprep.subr.mxu0 0.0
        %1051 = vmatpush1.msra.mxu0 0.0
        %1052 = vmatprep.subr.mxu0 0.0
        %1053 = vmatpush1.msra.mxu0 0.0
        %1054 = vmatprep.subr.mxu0 0.0
        %1055 = vmatpush1.msra.mxu0 0.0
        %1056 = vmatprep.subr.mxu0 0.0
        %1057 = vmatpush1.msra.mxu0 0.0
        %1058 = vmatprep.subr.mxu0 0.0
        %1059 = vmatpush1.msra.mxu0 0.0
        %1060 = vmatprep.subr.mxu0 0.0
        %1061 = vmatpush1.msra.mxu0 0.0
        %1062 = vmatprep.subr.mxu0 0.0
        %1063 = vmatpush1.msra.mxu0 0.0
        %1064 = vmatprep.subr.mxu0 0.0
        %1065 = vmatpush1.msra.mxu0 0.0
        %1066 = vmatprep.subr.mxu0 0.0
        %1067 = vmatpush1.msra.mxu0 0.0
        %1068 = vmatprep.subr.mxu0 0.0
        %1069 = vmatpush1.msra.mxu0 0.0
        %1070 = vmatprep.subr.mxu0 0.0
        %1071 = vmatpush1.msra.mxu0 0.0
        %1072 = vmatprep.subr.mxu0 0.0
        %1073 = vmatpush1.msra.mxu0 0.0
        %1074 = vmatprep.subr.mxu0 0.0
        %1075 = vmatpush1.msra.mxu0 0.0
        %1076 = vmatprep.subr.mxu0 0.0
        %1077 = vmatpush1.msra.mxu0 0.0
        %1078 = vmatprep.subr.mxu0 0.0
        %1079 = vmatpush1.msra.mxu0 0.0
        %1080 = vmatprep.subr.mxu0 0.0
        %1081 = vmatpush1.msra.mxu0 0.0
        %1082 = vmatprep.subr.mxu0 0.0
        %1083 = vmatpush1.msra.mxu0 0.0
        %1084 = vmatprep.subr.mxu0 0.0
        %1085 = vmatpush1.msra.mxu0 0.0
        %1086 = vmatprep.subr.mxu0 0.0
        %1087 = vmatpush1.msra.mxu0 0.0
        %1088 = vmatprep.subr.mxu0 0.0
        %1089 = vmatpush1.msra.mxu0 0.0
        %1090 = vmatprep.subr.mxu0 0.0
        %1091 = vmatpush1.msra.mxu0 0.0
        %1092 = vmatprep.mubr.f32.mxu0 0.0
        %1093 = vmatmul.mubr.f32.gmra.mrb[0].mxu0 %v1026
        %v1094 = vpop.f32.mrb[0].mxu0
        %v1095 = vadd.f32 %v1008, %v1094
        %v1096 = vpop.f32.mrb[0].mxu0
        %1097 = vdwg.mxu0
        %v1098 = vtanh.pop %v1095
        %1099 = vst.msk [vmem:[%s350] sm:$0xff] %vm375, %v1098
        %v1100 = vlaneseq
        %v1101 = vshrl.u32 %v1100, 7
        %v1102 = vsub.s32 %v580, %v1101
        %v1103 = vrot.slane %v832, %v1102
        %v1104 = vlaneseq
        %v1105 = vshrl.u32 %v1104, 7
        %v1106 = vsub.s32 %v580, %v1105
        %v1107 = vrot.slane %v837, %v1106
        %v1108 = vlaneseq
        %v1109 = vshrl.u32 %v1108, 7
        %v1110 = vsub.s32 %v580, %v1109
        %v1111 = vrot.slane %v842, %v1110
        %v1112 = vlaneseq
        %v1113 = vshrl.u32 %v1112, 7
        %v1114 = vsub.s32 %v580, %v1113
        %v1115 = vrot.slane %v847, %v1114
        %v1116 = vlaneseq
        %v1117 = vshrl.u32 %v1116, 7
        %v1118 = vsub.s32 %v580, %v1117
        %v1119 = vrot.slane %v852, %v1118
        %v1120 = vlaneseq
        %v1121 = vshrl.u32 %v1120, 7
        %v1122 = vsub.s32 %v580, %v1121
        %v1123 = vrot.slane %v857, %v1122
        %v1124 = vlaneseq
        %v1125 = vshrl.u32 %v1124, 7
        %v1126 = vsub.s32 %v580, %v1125
        %v1127 = vrot.slane %v862, %v1126
        %v1128 = vlaneseq
        %v1129 = vshrl.u32 %v1128, 7
        %v1130 = vsub.s32 %v580, %v1129
        %v1131 = vrot.slane %v867, %v1130
        %v1132 = vsel %vm613, %v1107, %v1103
        %v1133 = vsel %vm615, %v1111, %v1132
        %v1134 = vsel %vm617, %v1115, %v1133
        %v1135 = vsel %vm619, %v1119, %v1134
        %v1136 = vsel %vm621, %v1123, %v1135
        %v1137 = vsel %vm623, %v1127, %v1136
        %v1138 = vsel %vm625, %v1131, %v1137
        %1140 = vst.msk [vmem:[%s361] sm:$0xff] %vm628, %v1138
        %s1141 = sand.u32 %s151, 1
        %s1142 = scalar_lea.sflag [#allocation4], %s1141
        %s1143 = sand.u32 %s151, 1
        %s1144 = smul.addr %s1143, 8
        %s1145 = scalar_lea.vmem [#allocation11], %s1144
        %p1146 = scmp.lt.s32.totalorder %s28, 1
        %s1147 = scalar_select %p1146, %s28, 1
        %s1148 = smul.addr %s1147, 8
        %s1149 = scalar_lea.vmem %s6, %s1148
        // Predicated region
        $region61: #{tpu_custom_call.1} parent=39 // pred_check
          %p1150 = pneg %p161
        $region62: #{tpu_custom_call.1} parent=39 // pred_check_branch
          %1152 = sbr.rel (%p1150) target = $region64
        $region63: #{tpu_custom_call.1} parent=39 // pred_region
          %s1154 = ssub.s32 128, 128
          %1155 = vsyncadd %s1142, %s1154
          %s1156 = smul.addr %s28, 128
          %s1157 = scalar_lea.hbm %s5, %s1156
          %s1159 = sshll.u32 %s1145, 4
          %s1160 = int_to_ptr.vmem [resolvable:$true] %s1159
          %1162 = dma.vmem_to_hbm [thread:$0]  %s1160, 128, %s1157, %s1142
        $region64: #{tpu_custom_call.1} parent=39 // pred_fallthru
          _
        // Predicated region
        $region65: #{tpu_custom_call.1} parent=39 // pred_check
          %p1163 = pneg %p187
        $region66: #{tpu_custom_call.1} parent=39 // pred_check_branch
          %1165 = sbr.rel (%p1163) target = $region68
        $region67: #{tpu_custom_call.1} parent=39 // pred_region
          _
        $region68: #{tpu_custom_call.1} parent=39 // pred_fallthru
          _
      $region40: #{tpu_custom_call.1} parent=5 // pred_fallthru
        _
      %p1166 = scmp.le.s32.totalorder 2, %s23
      // Predicated region
      $region69: #{tpu_custom_call.1} parent=5 // pred_check
        %p1167 = pneg %p1166
      $region70: #{tpu_custom_call.1} parent=5 // pred_check_branch
        %1169 = sbr.rel (%p1167) target = $region72
      $region71: #{tpu_custom_call.1} parent=5 // pred_region
        %s1170 = ssub.s32 %s23, 2
        // Predicated region
        $region73: #{tpu_custom_call.1} parent=71 // pred_check
          %p1171 = pneg %p167
        $region74: #{tpu_custom_call.1} parent=71 // pred_check_branch
          %1173 = sbr.rel (%p1171) target = $region76
        $region75: #{tpu_custom_call.1} parent=71 // pred_region
          %s1174 = sand.u32 %s152, 1
          %s1175 = scalar_lea.sflag [#allocation4], %s1174
          %s1176 = sand.u32 %s152, 1
          %s1177 = smul.addr %s1176, 8
          %s1178 = scalar_lea.vmem [#allocation11], %s1177
          %1179 = dma.done %s1175, 128
        $region76: #{tpu_custom_call.1} parent=71 // pred_fallthru
          _
        // Predicated region
        $region77: #{tpu_custom_call.1} parent=71 // pred_check
          %p1180 = pneg %p193
        $region78: #{tpu_custom_call.1} parent=71 // pred_check_branch
          %1182 = sbr.rel (%p1180) target = $region80
        $region79: #{tpu_custom_call.1} parent=71 // pred_region
          %p1183 = scmp.lt.s32.totalorder %s29, 1
          %s1184 = scalar_select %p1183, %s29, 1
          %s1185 = smul.addr %s1184, 8
          %s1186 = scalar_lea.vmem %s6, %s1185
        $region80: #{tpu_custom_call.1} parent=71 // pred_fallthru
          _
      $region72: #{tpu_custom_call.1} parent=5 // pred_fallthru
        _
    $region6: #{tpu_custom_call.1} parent=1 // loop_footer
      %s27 = sadd.s32 1, %s23
    $region7: #{tpu_custom_call.1} parent=1 // loop_footer_branch
      %22 = sbr.rel target = $region3
    $region8: #{tpu_custom_call.1} parent=1 // loop_exit
      _
    %1187 = vsyncpa [#allocation3], 1
    %s1188 = scalar_lea.sflag [#allocation3], 1
    %1189 = vsyncpa %s1188, 1
    %1190 = vsyncpa [#allocation6], 1
    %s1191 = scalar_lea.sflag [#allocation6], 1
    %1192 = vsyncpa %s1191, 1
    %1193 = vsyncpa [#allocation9], 1
    %1194 = vsyncpa [#allocation4], 1
    %s1195 = scalar_lea.sflag [#allocation4], 1
    %1196 = vsyncpa %s1195, 1

</llo_original>
